<compile_context>
chip_gen: v5e
topology: v5e:2x2
jax: 0.10.0
libtpu: 0.0.40
codegen_flags: <defaults>
</compile_context>

<pallas_src>
import jax
import jax.numpy as jnp
from jax.experimental import pallas as pl
from jax.experimental.pallas import tpu as pltpu


LANE = 128


def _round_up(n, m):
    return ((n + m - 1) // m) * m


def actor_critic_kernel(x_ref, w1_ref, b1_ref, w2_ref, b2_ref,
                        wh_ref, bh_ref, out_ref):
    # Transposed layout everywhere: features on sublanes, batch on lanes.
    x = x_ref[...].astype(jnp.bfloat16)                           # [obs, TB]
    h1 = jnp.dot(w1_ref[...], x,
                 preferred_element_type=jnp.float32) + b1_ref[...]
    h1 = jnp.maximum(h1, 0.0).astype(jnp.bfloat16)                # [H1, TB]
    h2 = jnp.dot(w2_ref[...], h1,
                 preferred_element_type=jnp.float32) + b2_ref[...]
    h2 = jnp.maximum(h2, 0.0)                                     # [H2, TB] f32
    # fused (mu | value | zero-pad) head, all-f32 for critic precision;
    # output block [HR, TB] is lane-dense (TB multiple of 128).
    out_ref[...] = jnp.dot(wh_ref[...], h2,
                           preferred_element_type=jnp.float32) + bh_ref[...]


def prepare_params(params):
    """One-time parameter prep: transpose, fuse mu/value heads, bf16-cast the
    trunk weights, precompute std = exp(log_std). Call once, reuse every step."""
    (w1, b1, w2, b2, wmu, bmu, wv, bv, log_std) = params
    H1 = w1.shape[1]
    H2 = w2.shape[1]
    A = wmu.shape[1]
    HR = _round_up(A + 1, 8)            # mu (A) + value (1), padded to sublanes

    wht = (jnp.zeros((HR, H2), jnp.float32)
           .at[:A, :].set(wmu.T)
           .at[A, :].set(wv[:, 0]))
    bht = (jnp.zeros((HR, 1), jnp.float32)
           .at[:A, 0].set(bmu[0, :])
           .at[A, 0].set(bv[0, 0]))

    return dict(
        w1t=w1.T.astype(jnp.bfloat16),   # [H1, obs]  bf16 (MXU)
        b1t=b1.reshape(-1, 1),           # [H1, 1]    f32
        w2t=w2.T.astype(jnp.bfloat16),   # [H2, H1]   bf16
        b2t=b2.reshape(-1, 1),           # [H2, 1]    f32
        wht=wht,                         # [HR, H2]   f32 fused head
        bht=bht,                         # [HR, 1]    f32
        std=jnp.exp(log_std),            # [A]        state-independent
    )


def _choose_batch_tiling(B, block_b):
    """Pick (TB, Bp). TB must be a multiple of 128 (batch sits on the lane
    axis). Prefer an even number of >=2 tiles so v7x's two TensorCores both
    get work; amortize the ~0.35us per-grid-step overhead with big tiles."""
    blk = max(LANE, _round_up(block_b, LANE))
    Bp = _round_up(B, LANE)
    n = pl.cdiv(Bp, blk)
    if n == 1 and Bp >= 2 * LANE:
        n = 2                            # split single tile across both TCs
    if n > 1:
        n += n % 2                       # even tile count for 2-core balance
    TB = _round_up(pl.cdiv(Bp, n), LANE)
    return TB, n * TB


def actor_critic_forward(x, prep, *, block_b=2048):
    """x: [B, obs_dim] f32; prep: output of prepare_params().
    Returns (mu [B, A], std [A], value [B, 1])."""
    w1t, b1t = prep["w1t"], prep["b1t"]
    w2t, b2t = prep["w2t"], prep["b2t"]
    wht, bht = prep["wht"], prep["bht"]
    std = prep["std"]

    B, obs_dim = x.shape
    H1 = w1t.shape[0]
    H2 = w2t.shape[0]
    HR = wht.shape[0]
    A = std.shape[0]

    TB, Bp = _choose_batch_tiling(B, block_b)
    xt = x.T                                   # [obs, B]; batch -> lane axis
    if Bp != B:
        xt = jnp.pad(xt, ((0, 0), (0, Bp - B)))
    grid = (Bp // TB,)
    const = lambda i: (0, 0)                   # weights resident across B-grid

    flops = 2 * Bp * (obs_dim * H1 + H1 * H2 + H2 * HR)
    weight_bytes = (w1t.size * 2 + w2t.size * 2 + wht.size * 4
                    + (H1 + H2 + HR) * 4)
    bytes_accessed = (Bp * obs_dim * 4         # x (f32, cast in-kernel)
                      + weight_bytes           # resident weights/biases
                      + Bp * HR * 4)           # compact transposed output

    # VMEM estimate: x/out double buffers + double-buffered weights + temps.
    vmem_est = (2 * (obs_dim + HR) * TB * 4
                + 2 * weight_bytes
                + TB * (6 * H1 + 8 * H2))
    cp_kwargs = dict(dimension_semantics=("parallel",))
    if vmem_est > 12 * 1024 * 1024:            # beyond v5e's 16 MiB scoped default
        cp_kwargs["vmem_limit_bytes"] = min(2 * vmem_est, 100 * 1024 * 1024)

    out_t = pl.pallas_call(
        actor_critic_kernel,
        out_shape=jax.ShapeDtypeStruct((HR, Bp), jnp.float32),
        grid_spec=pltpu.PrefetchScalarGridSpec(
            num_scalar_prefetch=0,
            grid=grid,
            in_specs=[
                pl.BlockSpec((obs_dim, TB), lambda i: (0, i)),   # x tile (f32)
                pl.BlockSpec((H1, obs_dim), const),              # w1^T
                pl.BlockSpec((H1, 1), const),                    # b1
                pl.BlockSpec((H2, H1), const),                   # w2^T
                pl.BlockSpec((H2, 1), const),                    # b2
                pl.BlockSpec((HR, H2), const),                   # fused head W
                pl.BlockSpec((HR, 1), const),                    # fused head b
            ],
            out_specs=pl.BlockSpec((HR, TB), lambda i: (0, i)),
        ),
        compiler_params=pltpu.CompilerParams(**cp_kwargs),
        cost_estimate=pl.CostEstimate(flops=flops,
                                      transcendentals=0,
                                      bytes_accessed=bytes_accessed),
    )(xt, w1t, b1t, w2t, b2t, wht, bht)

    # NOTE: padded batch columns (B..Bp) of out_t hold garbage (bias through
    # ReLU of zero-padded x); they are sliced off here and must not be used.
    mu = out_t[:A, :B].T                        # [B, A]
    value = out_t[A:A + 1, :B].T                # [B, 1]
    return mu, std, value


def init_params(key, obs_dim, action_dim, hidden_sizes=(256, 256),
                log_std_init=-0.5):
    """Init matching the PyTorch module's parameter shapes
    (Linear weights stored as [in, out] for x @ W + b)."""
    def linear(key, fan_in, fan_out):
        kw, kb = jax.random.split(key)
        bound = 1.0 / jnp.sqrt(jnp.float32(fan_in))
        w = jax.random.uniform(kw, (fan_in, fan_out), jnp.float32, -bound, bound)
        b = jax.random.uniform(kb, (1, fan_out), jnp.float32, -bound, bound)
        return w, b

    k1, k2, k3, k4 = jax.random.split(key, 4)
    w1, b1 = linear(k1, obs_dim, hidden_sizes[0])
    w2, b2 = linear(k2, hidden_sizes[0], hidden_sizes[1])
    wmu, bmu = linear(k3, hidden_sizes[1], action_dim)
    wv, bv = linear(k4, hidden_sizes[1], 1)
    log_std = jnp.full((action_dim,), log_std_init, dtype=jnp.float32)
    return (w1, b1, w2, b2, wmu, bmu, wv, bv, log_std)


def reference_forward(x, params):
    """Pure-JAX f32 reference matching the PyTorch module."""
    (w1, b1, w2, b2, wmu, bmu, wv, bv, log_std) = params
    h = jnp.maximum(x @ w1 + b1, 0.0)
    h = jnp.maximum(h @ w2 + b2, 0.0)
    mu = h @ wmu + bmu
    value = h @ wv + bv
    std = jnp.exp(log_std)
    return mu, std, value


# TODO(synk): ActorCritic.act() (Normal sampling + log_prob) is not part of
# forward(); implement on top of (mu, std, value) with jax.random if needed.

if __name__ == "__main__":
    obs_dim = 8
    action_dim = 4
    hidden_sizes = (256, 256)

    key = jax.random.PRNGKey(0)
    kp, kx1, kx2 = jax.random.split(key, 3)
    params = init_params(kp, obs_dim, action_dim, hidden_sizes)
    prep = prepare_params(params)

    # batch=8 exercises the single-tile path; batch=200 exercises padding,
    # a 2-step batch grid (megacore split) and the wrapper slicing.
    for batch, kx in ((8, kx1), (200, kx2)):
        x = jax.random.normal(kx, (batch, obs_dim), dtype=jnp.float32)
        mu, std, value = actor_critic_forward(x, prep)
        jax.block_until_ready((mu, std, value))

        mu_ref, std_ref, value_ref = reference_forward(x, params)
        assert mu.shape == (batch, action_dim)
        assert std.shape == (action_dim,)
        assert value.shape == (batch, 1)
        # bf16 trunk on the MXU -> loosened tolerances vs. the f32 reference
        assert jnp.allclose(std, std_ref, atol=1e-6, rtol=1e-6)
        assert jnp.allclose(mu, mu_ref, atol=5e-2, rtol=5e-2)
        assert jnp.allclose(value, value_ref, atol=5e-2, rtol=5e-2)

    print("KERNEL_OK")
</pallas_src>

<mosaic_0001>
module attributes {stable_mosaic.version = 11 : i64} {
  func.func @actor_critic_kernel(%arg0: i32, %arg1: memref<8x128xf32, #tpu.memory_space<vmem>>, %arg2: memref<256x8xbf16, #tpu.memory_space<vmem>>, %arg3: memref<256x1xf32, #tpu.memory_space<vmem>>, %arg4: memref<256x256xbf16, #tpu.memory_space<vmem>>, %arg5: memref<256x1xf32, #tpu.memory_space<vmem>>, %arg6: memref<8x256xf32, #tpu.memory_space<vmem>>, %arg7: memref<8x1xf32, #tpu.memory_space<vmem>>, %arg8: memref<8x128xf32, #tpu.memory_space<vmem>>) attributes {dimension_semantics = [#tpu.dimension_semantics<parallel>], iteration_bounds = array<i64: 1>, scalar_prefetch = 0 : i64, scratch_operands = 0 : i64, tpu.core_type = #tpu.core_type<tc>, window_params = [{transform_indices = @transform_0, window_bounds = array<i64: 8, 128>}, {pipeline_mode = #tpu.pipeline_mode<synchronous>, transform_indices = @transform_1, window_bounds = array<i64: 256, 8>}, {pipeline_mode = #tpu.pipeline_mode<synchronous>, transform_indices = @transform_2, window_bounds = array<i64: 256, 1>}, {pipeline_mode = #tpu.pipeline_mode<synchronous>, transform_indices = @transform_3, window_bounds = array<i64: 256, 256>}, {pipeline_mode = #tpu.pipeline_mode<synchronous>, transform_indices = @transform_4, window_bounds = array<i64: 256, 1>}, {pipeline_mode = #tpu.pipeline_mode<synchronous>, transform_indices = @transform_5, window_bounds = array<i64: 8, 256>}, {pipeline_mode = #tpu.pipeline_mode<synchronous>, transform_indices = @transform_6, window_bounds = array<i64: 8, 1>}, {transform_indices = @transform_7, window_bounds = array<i64: 8, 128>}]} {
    %c0 = arith.constant 0 : index
    %c0_0 = arith.constant 0 : index
    %0 = vector.load %arg1[%c0, %c0_0] : memref<8x128xf32, #tpu.memory_space<vmem>>, vector<8x128xf32>
    %1 = arith.truncf %0 : vector<8x128xf32> to vector<8x128xbf16>
    %c0_1 = arith.constant 0 : index
    %c0_2 = arith.constant 0 : index
    %2 = vector.load %arg2[%c0_1, %c0_2] : memref<256x8xbf16, #tpu.memory_space<vmem>>, vector<256x8xbf16>
    %cst = arith.constant dense<0.000000e+00> : vector<256x128xf32>
    %3 = tpu.matmul %2, %1, %cst {dimension_numbers = #tpu.dot_dimension_numbers<[1], [0], [0], [1], [0, 0, 1, 1], [], []>} : vector<256x8xbf16>, vector<8x128xbf16>, vector<256x128xf32> -> vector<256x128xf32>
    %c0_3 = arith.constant 0 : index
    %c0_4 = arith.constant 0 : index
    %4 = vector.load %arg3[%c0_3, %c0_4] : memref<256x1xf32, #tpu.memory_space<vmem>>, vector<256x1xf32>
    %5 = vector.broadcast %4 : vector<256x1xf32> to vector<256x128xf32>
    %6 = arith.addf %3, %5 : vector<256x128xf32>
    %cst_5 = arith.constant 0.000000e+00 : f32
    %7 = vector.broadcast %cst_5 : f32 to vector<256x128xf32>
    %8 = arith.maximumf %6, %7 : vector<256x128xf32>
    %9 = arith.truncf %8 : vector<256x128xf32> to vector<256x128xbf16>
    %c0_6 = arith.constant 0 : index
    %c0_7 = arith.constant 0 : index
    %10 = vector.load %arg4[%c0_6, %c0_7] : memref<256x256xbf16, #tpu.memory_space<vmem>>, vector<256x256xbf16>
    %cst_8 = arith.constant dense<0.000000e+00> : vector<256x128xf32>
    %11 = tpu.matmul %10, %9, %cst_8 {dimension_numbers = #tpu.dot_dimension_numbers<[1], [0], [0], [1], [0, 0, 1, 1], [], []>} : vector<256x256xbf16>, vector<256x128xbf16>, vector<256x128xf32> -> vector<256x128xf32>
    %c0_9 = arith.constant 0 : index
    %c0_10 = arith.constant 0 : index
    %12 = vector.load %arg5[%c0_9, %c0_10] : memref<256x1xf32, #tpu.memory_space<vmem>>, vector<256x1xf32>
    %13 = vector.broadcast %12 : vector<256x1xf32> to vector<256x128xf32>
    %14 = arith.addf %11, %13 : vector<256x128xf32>
    %cst_11 = arith.constant 0.000000e+00 : f32
    %15 = vector.broadcast %cst_11 : f32 to vector<256x128xf32>
    %16 = arith.maximumf %14, %15 : vector<256x128xf32>
    %c0_12 = arith.constant 0 : index
    %c0_13 = arith.constant 0 : index
    %17 = vector.load %arg6[%c0_12, %c0_13] : memref<8x256xf32, #tpu.memory_space<vmem>>, vector<8x256xf32>
    %cst_14 = arith.constant dense<0.000000e+00> : vector<8x128xf32>
    %18 = tpu.matmul %17, %16, %cst_14 {dimension_numbers = #tpu.dot_dimension_numbers<[1], [0], [0], [1], [0, 0, 1, 1], [], []>} : vector<8x256xf32>, vector<256x128xf32>, vector<8x128xf32> -> vector<8x128xf32>
    %c0_15 = arith.constant 0 : index
    %c0_16 = arith.constant 0 : index
    %19 = vector.load %arg7[%c0_15, %c0_16] : memref<8x1xf32, #tpu.memory_space<vmem>>, vector<8x1xf32>
    %20 = vector.broadcast %19 : vector<8x1xf32> to vector<8x128xf32>
    %21 = arith.addf %18, %20 : vector<8x128xf32>
    %c0_17 = arith.constant 0 : index
    %c0_18 = arith.constant 0 : index
    %22 = vector.load %arg8[%c0_17, %c0_18] : memref<8x128xf32, #tpu.memory_space<vmem>>, vector<8x128xf32>
    tpu.vector_store %arg8[%c0_17, %c0_18], %21 {strides = array<i32>} : memref<8x128xf32, #tpu.memory_space<vmem>>, vector<8x128xf32>,
    return
  }
  func.func @transform_0(%arg0: i32) -> (i32, i32) {
    %c0_i32 = arith.constant 0 : i32
    %c0_i32_0 = arith.constant 0 : i32
    return %c0_i32, %arg0 : i32, i32
  }
  func.func @transform_1(%arg0: i32) -> (i32, i32) {
    %c0_i32 = arith.constant 0 : i32
    %c0_i32_0 = arith.constant 0 : i32
    %c0_i32_1 = arith.constant 0 : i32
    return %c0_i32, %c0_i32_0 : i32, i32
  }
  func.func @transform_2(%arg0: i32) -> (i32, i32) {
    %c0_i32 = arith.constant 0 : i32
    %c0_i32_0 = arith.constant 0 : i32
    %c0_i32_1 = arith.constant 0 : i32
    return %c0_i32, %c0_i32_0 : i32, i32
  }
  func.func @transform_3(%arg0: i32) -> (i32, i32) {
    %c0_i32 = arith.constant 0 : i32
    %c0_i32_0 = arith.constant 0 : i32
    %c0_i32_1 = arith.constant 0 : i32
    return %c0_i32, %c0_i32_0 : i32, i32
  }
  func.func @transform_4(%arg0: i32) -> (i32, i32) {
    %c0_i32 = arith.constant 0 : i32
    %c0_i32_0 = arith.constant 0 : i32
    %c0_i32_1 = arith.constant 0 : i32
    return %c0_i32, %c0_i32_0 : i32, i32
  }
  func.func @transform_5(%arg0: i32) -> (i32, i32) {
    %c0_i32 = arith.constant 0 : i32
    %c0_i32_0 = arith.constant 0 : i32
    %c0_i32_1 = arith.constant 0 : i32
    return %c0_i32, %c0_i32_0 : i32, i32
  }
  func.func @transform_6(%arg0: i32) -> (i32, i32) {
    %c0_i32 = arith.constant 0 : i32
    %c0_i32_0 = arith.constant 0 : i32
    %c0_i32_1 = arith.constant 0 : i32
    return %c0_i32, %c0_i32_0 : i32, i32
  }
  func.func @transform_7(%arg0: i32) -> (i32, i32) {
    %c0_i32 = arith.constant 0 : i32
    %c0_i32_0 = arith.constant 0 : i32
    return %c0_i32, %arg0 : i32, i32
  }
}

</mosaic_0001>

<llo_original>
// kernel: tpu_custom_call.1
$region0: #{tpu_custom_call.1}
  #allocation0 [shape = 'u32[]', space=smem, size = 0x4, offset = 0x4, fixed_abs, tag = 'smem constant byte address 0x4 - core index']
  #allocation1 [shape = 'u32[72,128]{1,0:T(1,128)}', space=vmem, size = 0x9000, scoped, tag = 'internal scratch']
  %s0 = inlined_call_operand.vmem [shape: f32[8,128], index: 0, kind: input, shape index: {}]
  %s1 = inlined_call_operand.vmem [shape: bf16[256,8], index: 1, kind: input, shape index: {}]
  %s2 = inlined_call_operand.vmem [shape: f32[256,1], index: 2, kind: input, shape index: {}]
  %s3 = inlined_call_operand.vmem [shape: bf16[256,256], index: 3, kind: input, shape index: {}]
  %s4 = inlined_call_operand.vmem [shape: f32[256,1], index: 4, kind: input, shape index: {}]
  %s5 = inlined_call_operand.vmem [shape: f32[8,256], index: 5, kind: input, shape index: {}]
  %s6 = inlined_call_operand.vmem [shape: f32[8,1], index: 6, kind: input, shape index: {}]
  %s7 = inlined_call_operand.hbm [shape: f32[8,128], index: 7, kind: output, shape index: {}]
  %s8 = sld [smem:[#allocation0]]
  $region38: #{tpu_custom_call.1} parent=0
    _
  %s10 = ssub.s32 1, %s8
  %s11 = scalar_select 0, %s10, %s8
  $region1: #{tpu_custom_call.1} parent=0
    #allocation2 [shape = 'u8[4096]{0}', space=vmem, size = 0x1000, scoped, tag = 'output window, operand 0, single buffered']
    #allocation3 [shape = 's32[1]{0}', space=sflag, size = 0x4, scoped, tag = 'scoped memory for tpu_custom_call.1']
    %12 = vsyncpa [#allocation3], 0
    // Predicated region
    $region2: #{tpu_custom_call.1} parent=1 // pred_check
      _
    $region3: #{tpu_custom_call.1} parent=1 // pred_check_branch
      %14 = sbr.rel (0) target = $region5
    $region4: #{tpu_custom_call.1} parent=1 // pred_region
      _
    $region5: #{tpu_custom_call.1} parent=1 // pred_fallthru
      _
    // Predicated region
    $region6: #{tpu_custom_call.1} parent=1 // pred_check
      _
    $region7: #{tpu_custom_call.1} parent=1 // pred_check_branch
      %16 = sbr.rel (0) target = $region9
    $region8: #{tpu_custom_call.1} parent=1 // pred_region
      _
    $region9: #{tpu_custom_call.1} parent=1 // pred_fallthru
      _
    // Predicated region
    $region10: #{tpu_custom_call.1} parent=1 // pred_check
      _
    $region11: #{tpu_custom_call.1} parent=1 // pred_check_branch
      %18 = sbr.rel (0) target = $region13
    $region12: #{tpu_custom_call.1} parent=1 // pred_region
      _
    $region13: #{tpu_custom_call.1} parent=1 // pred_fallthru
      _
    // Predicated region
    $region14: #{tpu_custom_call.1} parent=1 // pred_check
      _
    $region15: #{tpu_custom_call.1} parent=1 // pred_check_branch
      %20 = sbr.rel (0) target = $region17
    $region16: #{tpu_custom_call.1} parent=1 // pred_region
      _
    $region17: #{tpu_custom_call.1} parent=1 // pred_fallthru
      _
    // Predicated region
    $region18: #{tpu_custom_call.1} parent=1 // pred_check
      _
    $region19: #{tpu_custom_call.1} parent=1 // pred_check_branch
      %22 = sbr.rel (0) target = $region21
    $region20: #{tpu_custom_call.1} parent=1 // pred_region
      _
    $region21: #{tpu_custom_call.1} parent=1 // pred_fallthru
      _
    // Predicated region
    $region22: #{tpu_custom_call.1} parent=1 // pred_check
      _
    $region23: #{tpu_custom_call.1} parent=1 // pred_check_branch
      %24 = sbr.rel (0) target = $region25
    $region24: #{tpu_custom_call.1} parent=1 // pred_region
      _
    $region25: #{tpu_custom_call.1} parent=1 // pred_fallthru
      _
    // Predicated region
    $region26: #{tpu_custom_call.1} parent=1 // pred_check
      _
    $region27: #{tpu_custom_call.1} parent=1 // pred_check_branch
      %26 = sbr.rel (0) target = $region29
    $region28: #{tpu_custom_call.1} parent=1 // pred_region
      _
    $region29: #{tpu_custom_call.1} parent=1 // pred_fallthru
      _
    %v28 = vld [vmem:[%s0] sm:$0xff]
    %v29 = vpack.c.bf16 %v28, %v28
    %v30 = vld [vmem:[%s1] sm:$0xf]
    %v31 = vld [vmem:[%s1 + $0x4] sm:$0xf]
    %v32 = vld [vmem:[%s1 + $0x8] sm:$0xf]
    %v33 = vld [vmem:[%s1 + $0xc] sm:$0xf]
    %v34 = vld [vmem:[%s1 + $0x10] sm:$0xf]
    %v35 = vld [vmem:[%s1 + $0x14] sm:$0xf]
    %v36 = vld [vmem:[%s1 + $0x18] sm:$0xf]
    %v37 = vld [vmem:[%s1 + $0x1c] sm:$0xf]
    %v38 = vld [vmem:[%s1 + $0x20] sm:$0xf]
    %v39 = vld [vmem:[%s1 + $0x24] sm:$0xf]
    %v40 = vld [vmem:[%s1 + $0x28] sm:$0xf]
    %v41 = vld [vmem:[%s1 + $0x2c] sm:$0xf]
    %v42 = vld [vmem:[%s1 + $0x30] sm:$0xf]
    %v43 = vld [vmem:[%s1 + $0x34] sm:$0xf]
    %v44 = vld [vmem:[%s1 + $0x38] sm:$0xf]
    %v45 = vld [vmem:[%s1 + $0x3c] sm:$0xf]
    %v46 = vld [vmem:[%s1 + $0x40] sm:$0xf]
    %v47 = vld [vmem:[%s1 + $0x44] sm:$0xf]
    %v48 = vld [vmem:[%s1 + $0x48] sm:$0xf]
    %v49 = vld [vmem:[%s1 + $0x4c] sm:$0xf]
    %v50 = vld [vmem:[%s1 + $0x50] sm:$0xf]
    %v51 = vld [vmem:[%s1 + $0x54] sm:$0xf]
    %v52 = vld [vmem:[%s1 + $0x58] sm:$0xf]
    %v53 = vld [vmem:[%s1 + $0x5c] sm:$0xf]
    %v54 = vld [vmem:[%s1 + $0x60] sm:$0xf]
    %v55 = vld [vmem:[%s1 + $0x64] sm:$0xf]
    %v56 = vld [vmem:[%s1 + $0x68] sm:$0xf]
    %v57 = vld [vmem:[%s1 + $0x6c] sm:$0xf]
    %v58 = vld [vmem:[%s1 + $0x70] sm:$0xf]
    %v59 = vld [vmem:[%s1 + $0x74] sm:$0xf]
    %v60 = vld [vmem:[%s1 + $0x78] sm:$0xf]
    %v61 = vld [vmem:[%s1 + $0x7c] sm:$0xf]
    %v62 = vld [vmem:[%s2] sm:$0xff]
    %v63 = vld [vmem:[%s2 + $0x8] sm:$0xff]
    %v64 = vld [vmem:[%s2 + $0x10] sm:$0xff]
    %v65 = vld [vmem:[%s2 + $0x18] sm:$0xff]
    %v66 = vld [vmem:[%s2 + $0x20] sm:$0xff]
    %v67 = vld [vmem:[%s2 + $0x28] sm:$0xff]
    %v68 = vld [vmem:[%s2 + $0x30] sm:$0xff]
    %v69 = vld [vmem:[%s2 + $0x38] sm:$0xff]
    %v70 = vld [vmem:[%s2 + $0x40] sm:$0xff]
    %v71 = vld [vmem:[%s2 + $0x48] sm:$0xff]
    %v72 = vld [vmem:[%s2 + $0x50] sm:$0xff]
    %v73 = vld [vmem:[%s2 + $0x58] sm:$0xff]
    %v74 = vld [vmem:[%s2 + $0x60] sm:$0xff]
    %v75 = vld [vmem:[%s2 + $0x68] sm:$0xff]
    %v76 = vld [vmem:[%s2 + $0x70] sm:$0xff]
    %v77 = vld [vmem:[%s2 + $0x78] sm:$0xff]
    %v78 = vld [vmem:[%s2 + $0x80] sm:$0xff]
    %v79 = vld [vmem:[%s2 + $0x88] sm:$0xff]
    %v80 = vld [vmem:[%s2 + $0x90] sm:$0xff]
    %v81 = vld [vmem:[%s2 + $0x98] sm:$0xff]
    %v82 = vld [vmem:[%s2 + $0xa0] sm:$0xff]
    %v83 = vld [vmem:[%s2 + $0xa8] sm:$0xff]
    %v84 = vld [vmem:[%s2 + $0xb0] sm:$0xff]
    %v85 = vld [vmem:[%s2 + $0xb8] sm:$0xff]
    %v86 = vld [vmem:[%s2 + $0xc0] sm:$0xff]
    %v87 = vld [vmem:[%s2 + $0xc8] sm:$0xff]
    %v88 = vld [vmem:[%s2 + $0xd0] sm:$0xff]
    %v89 = vld [vmem:[%s2 + $0xd8] sm:$0xff]
    %v90 = vld [vmem:[%s2 + $0xe0] sm:$0xff]
    %v91 = vld [vmem:[%s2 + $0xe8] sm:$0xff]
    %v92 = vld [vmem:[%s2 + $0xf0] sm:$0xff]
    %v93 = vld [vmem:[%s2 + $0xf8] sm:$0xff]
    %95 = vset.pattern.permute.xlu0 0
    %96 = vperm.xlu0 %95, %v62
    %v97 = vpop.permute.xlu0 %96
    %100 = vset.pattern.permute.xlu0 0
    %101 = vperm.xlu0 %100, %v63
    %v102 = vpop.permute.xlu0 %101
    %105 = vset.pattern.permute.xlu0 0
    %106 = vperm.xlu0 %105, %v64
    %v107 = vpop.permute.xlu0 %106
    %110 = vset.pattern.permute.xlu0 0
    %111 = vperm.xlu0 %110, %v65
    %v112 = vpop.permute.xlu0 %111
    %115 = vset.pattern.permute.xlu0 0
    %116 = vperm.xlu0 %115, %v66
    %v117 = vpop.permute.xlu0 %116
    %120 = vset.pattern.permute.xlu0 0
    %121 = vperm.xlu0 %120, %v67
    %v122 = vpop.permute.xlu0 %121
    %125 = vset.pattern.permute.xlu0 0
    %126 = vperm.xlu0 %125, %v68
    %v127 = vpop.permute.xlu0 %126
    %130 = vset.pattern.permute.xlu0 0
    %131 = vperm.xlu0 %130, %v69
    %v132 = vpop.permute.xlu0 %131
    %135 = vset.pattern.permute.xlu0 0
    %136 = vperm.xlu0 %135, %v70
    %v137 = vpop.permute.xlu0 %136
    %140 = vset.pattern.permute.xlu0 0
    %141 = vperm.xlu0 %140, %v71
    %v142 = vpop.permute.xlu0 %141
    %145 = vset.pattern.permute.xlu0 0
    %146 = vperm.xlu0 %145, %v72
    %v147 = vpop.permute.xlu0 %146
    %150 = vset.pattern.permute.xlu0 0
    %151 = vperm.xlu0 %150, %v73
    %v152 = vpop.permute.xlu0 %151
    %155 = vset.pattern.permute.xlu0 0
    %156 = vperm.xlu0 %155, %v74
    %v157 = vpop.permute.xlu0 %156
    %160 = vset.pattern.permute.xlu0 0
    %161 = vperm.xlu0 %160, %v75
    %v162 = vpop.permute.xlu0 %161
    %165 = vset.pattern.permute.xlu0 0
    %166 = vperm.xlu0 %165, %v76
    %v167 = vpop.permute.xlu0 %166
    %170 = vset.pattern.permute.xlu0 0
    %171 = vperm.xlu0 %170, %v77
    %v172 = vpop.permute.xlu0 %171
    %175 = vset.pattern.permute.xlu0 0
    %176 = vperm.xlu0 %175, %v78
    %v177 = vpop.permute.xlu0 %176
    %180 = vset.pattern.permute.xlu0 0
    %181 = vperm.xlu0 %180, %v79
    %v182 = vpop.permute.xlu0 %181
    %185 = vset.pattern.permute.xlu0 0
    %186 = vperm.xlu0 %185, %v80
    %v187 = vpop.permute.xlu0 %186
    %190 = vset.pattern.permute.xlu0 0
    %191 = vperm.xlu0 %190, %v81
    %v192 = vpop.permute.xlu0 %191
    %195 = vset.pattern.permute.xlu0 0
    %196 = vperm.xlu0 %195, %v82
    %v197 = vpop.permute.xlu0 %196
    %200 = vset.pattern.permute.xlu0 0
    %201 = vperm.xlu0 %200, %v83
    %v202 = vpop.permute.xlu0 %201
    %205 = vset.pattern.permute.xlu0 0
    %206 = vperm.xlu0 %205, %v84
    %v207 = vpop.permute.xlu0 %206
    %210 = vset.pattern.permute.xlu0 0
    %211 = vperm.xlu0 %210, %v85
    %v212 = vpop.permute.xlu0 %211
    %215 = vset.pattern.permute.xlu0 0
    %216 = vperm.xlu0 %215, %v86
    %v217 = vpop.permute.xlu0 %216
    %220 = vset.pattern.permute.xlu0 0
    %221 = vperm.xlu0 %220, %v87
    %v222 = vpop.permute.xlu0 %221
    %225 = vset.pattern.permute.xlu0 0
    %226 = vperm.xlu0 %225, %v88
    %v227 = vpop.permute.xlu0 %226
    %230 = vset.pattern.permute.xlu0 0
    %231 = vperm.xlu0 %230, %v89
    %v232 = vpop.permute.xlu0 %231
    %235 = vset.pattern.permute.xlu0 0
    %236 = vperm.xlu0 %235, %v90
    %v237 = vpop.permute.xlu0 %236
    %240 = vset.pattern.permute.xlu0 0
    %241 = vperm.xlu0 %240, %v91
    %v242 = vpop.permute.xlu0 %241
    %245 = vset.pattern.permute.xlu0 0
    %246 = vperm.xlu0 %245, %v92
    %v247 = vpop.permute.xlu0 %246
    %250 = vset.pattern.permute.xlu0 0
    %251 = vperm.xlu0 %250, %v93
    %v252 = vpop.permute.xlu0 %251
    %v286 = vunpack.c.l.b16 %v30
    %v287 = vunpack.c.l.b16 %v31
    %v288 = vunpack.c.l.b16 %v32
    %v289 = vunpack.c.l.b16 %v33
    %v290 = vunpack.c.l.b16 %v34
    %v291 = vunpack.c.l.b16 %v35
    %v292 = vunpack.c.l.b16 %v36
    %v293 = vunpack.c.l.b16 %v37
    %v294 = vunpack.c.l.b16 %v38
    %v295 = vunpack.c.l.b16 %v39
    %v296 = vunpack.c.l.b16 %v40
    %v297 = vunpack.c.l.b16 %v41
    %v298 = vunpack.c.l.b16 %v42
    %v299 = vunpack.c.l.b16 %v43
    %v300 = vunpack.c.l.b16 %v44
    %v301 = vunpack.c.l.b16 %v45
    %v302 = vunpack.c.l.b16 %v46
    %v303 = vunpack.c.l.b16 %v47
    %v304 = vunpack.c.l.b16 %v48
    %v305 = vunpack.c.l.b16 %v49
    %v306 = vunpack.c.l.b16 %v50
    %v307 = vunpack.c.l.b16 %v51
    %v308 = vunpack.c.l.b16 %v52
    %v309 = vunpack.c.l.b16 %v53
    %v310 = vunpack.c.l.b16 %v54
    %v311 = vunpack.c.l.b16 %v55
    %v312 = vunpack.c.l.b16 %v56
    %v313 = vunpack.c.l.b16 %v57
    %v314 = vunpack.c.l.b16 %v58
    %v315 = vunpack.c.l.b16 %v59
    %v316 = vunpack.c.l.b16 %v60
    %v317 = vunpack.c.l.b16 %v61
    %v318 = vpack.c.b16 %v287, %v286
    %v319 = vpack.c.b16 %v289, %v288
    %v320 = vpack.c.b16 %v291, %v290
    %v321 = vpack.c.b16 %v293, %v292
    %v322 = vpack.c.b16 %v295, %v294
    %v323 = vpack.c.b16 %v297, %v296
    %v324 = vpack.c.b16 %v299, %v298
    %v325 = vpack.c.b16 %v301, %v300
    %v326 = vpack.c.b16 %v303, %v302
    %v327 = vpack.c.b16 %v305, %v304
    %v328 = vpack.c.b16 %v307, %v306
    %v329 = vpack.c.b16 %v309, %v308
    %v330 = vpack.c.b16 %v311, %v310
    %v331 = vpack.c.b16 %v313, %v312
    %v332 = vpack.c.b16 %v315, %v314
    %v333 = vpack.c.b16 %v317, %v316
    %vm334 = vcmask 64512
    %v336 = vsel %vm334, %v318, 0
    %v339 = vsel %vm334, %v319, 0
    %v342 = vsel %vm334, %v320, 0
    %v345 = vsel %vm334, %v321, 0
    %v348 = vsel %vm334, %v322, 0
    %v351 = vsel %vm334, %v323, 0
    %v354 = vsel %vm334, %v324, 0
    %v357 = vsel %vm334, %v325, 0
    %v360 = vsel %vm334, %v326, 0
    %v363 = vsel %vm334, %v327, 0
    %v366 = vsel %vm334, %v328, 0
    %v369 = vsel %vm334, %v329, 0
    %v372 = vsel %vm334, %v330, 0
    %v375 = vsel %vm334, %v331, 0
    %v378 = vsel %vm334, %v332, 0
    %v381 = vsel %vm334, %v333, 0
    %vm383 = vcmask 1043456
    %v385 = vsel %vm383, %v29, 0
    %387 = vmatpush.bf16.msra.mxu0 0
    %388 = vmatpush.bf16.msra.mxu0 0
    %389 = vmatpush.bf16.msra.mxu0 0
    %390 = vmatpush.bf16.msra.mxu0 0
    %391 = vmatpush.bf16.msra.mxu0 0
    %392 = vmatpush.bf16.msra.mxu0 0
    %393 = vmatpush.bf16.msra.mxu0 0
    %394 = vmatpush.bf16.msra.mxu0 %v385
    %395 = vmatmul.bf16.gmra.mxu0 %v336
    %v396 = vpop.f32.mrf.mxu0
    %v397 = vadd.f32 %v97, %v396
    %v398 = vpop.f32.mrf.mxu0
    %v399 = vadd.f32 %v102, %v398
    %400 = vmatmul.bf16.gmra.mxu0 %v339
    %v401 = vpop.f32.mrf.mxu0
    %v402 = vadd.f32 %v107, %v401
    %v403 = vpop.f32.mrf.mxu0
    %v404 = vadd.f32 %v112, %v403
    %405 = vmatmul.bf16.gmra.mxu0 %v342
    %v406 = vpop.f32.mrf.mxu0
    %v407 = vadd.f32 %v117, %v406
    %v408 = vpop.f32.mrf.mxu0
    %v409 = vadd.f32 %v122, %v408
    %410 = vmatmul.bf16.gmra.mxu0 %v345
    %v411 = vpop.f32.mrf.mxu0
    %v412 = vadd.f32 %v127, %v411
    %v413 = vpop.f32.mrf.mxu0
    %v414 = vadd.f32 %v132, %v413
    %415 = vmatmul.bf16.gmra.mxu0 %v348
    %v416 = vpop.f32.mrf.mxu0
    %v417 = vadd.f32 %v137, %v416
    %v418 = vpop.f32.mrf.mxu0
    %v419 = vadd.f32 %v142, %v418
    %420 = vmatmul.bf16.gmra.mxu0 %v351
    %v421 = vpop.f32.mrf.mxu0
    %v422 = vadd.f32 %v147, %v421
    %v423 = vpop.f32.mrf.mxu0
    %v424 = vadd.f32 %v152, %v423
    %425 = vmatmul.bf16.gmra.mxu0 %v354
    %v426 = vpop.f32.mrf.mxu0
    %v427 = vadd.f32 %v157, %v426
    %v428 = vpop.f32.mrf.mxu0
    %v429 = vadd.f32 %v162, %v428
    %430 = vmatmul.bf16.gmra.mxu0 %v357
    %v431 = vpop.f32.mrf.mxu0
    %v432 = vadd.f32 %v167, %v431
    %v433 = vpop.f32.mrf.mxu0
    %v434 = vadd.f32 %v172, %v433
    %435 = vmatmul.bf16.gmra.mxu0 %v360
    %v436 = vpop.f32.mrf.mxu0
    %v437 = vadd.f32 %v177, %v436
    %v438 = vpop.f32.mrf.mxu0
    %v439 = vadd.f32 %v182, %v438
    %440 = vmatmul.bf16.gmra.mxu0 %v363
    %v441 = vpop.f32.mrf.mxu0
    %v442 = vadd.f32 %v187, %v441
    %v443 = vpop.f32.mrf.mxu0
    %v444 = vadd.f32 %v192, %v443
    %445 = vmatmul.bf16.gmra.mxu0 %v366
    %v446 = vpop.f32.mrf.mxu0
    %v447 = vadd.f32 %v197, %v446
    %v448 = vpop.f32.mrf.mxu0
    %v449 = vadd.f32 %v202, %v448
    %450 = vmatmul.bf16.gmra.mxu0 %v369
    %v451 = vpop.f32.mrf.mxu0
    %v452 = vadd.f32 %v207, %v451
    %v453 = vpop.f32.mrf.mxu0
    %v454 = vadd.f32 %v212, %v453
    %455 = vmatmul.bf16.gmra.mxu0 %v372
    %v456 = vpop.f32.mrf.mxu0
    %v457 = vadd.f32 %v217, %v456
    %v458 = vpop.f32.mrf.mxu0
    %v459 = vadd.f32 %v222, %v458
    %460 = vmatmul.bf16.gmra.mxu0 %v375
    %v461 = vpop.f32.mrf.mxu0
    %v462 = vadd.f32 %v227, %v461
    %v463 = vpop.f32.mrf.mxu0
    %v464 = vadd.f32 %v232, %v463
    %465 = vmatmul.bf16.gmra.mxu0 %v378
    %v466 = vpop.f32.mrf.mxu0
    %v467 = vadd.f32 %v237, %v466
    %v468 = vpop.f32.mrf.mxu0
    %v469 = vadd.f32 %v242, %v468
    %470 = vmatmul.bf16.gmra.mxu0 %v381
    %v471 = vpop.f32.mrf.mxu0
    %v472 = vadd.f32 %v247, %v471
    %v473 = vpop.f32.mrf.mxu0
    %v474 = vadd.f32 %v252, %v473
    %475 = vdwg.mxu0
    %v476 = vmax.f32 %v397, 0.0
    %v477 = vmax.f32 %v399, 0.0
    %v478 = vmax.f32 %v402, 0.0
    %v479 = vmax.f32 %v404, 0.0
    %v480 = vmax.f32 %v407, 0.0
    %v481 = vmax.f32 %v409, 0.0
    %v482 = vmax.f32 %v412, 0.0
    %v483 = vmax.f32 %v414, 0.0
    %v484 = vmax.f32 %v417, 0.0
    %v485 = vmax.f32 %v419, 0.0
    %v486 = vmax.f32 %v422, 0.0
    %v487 = vmax.f32 %v424, 0.0
    %v488 = vmax.f32 %v427, 0.0
    %v489 = vmax.f32 %v429, 0.0
    %v490 = vmax.f32 %v432, 0.0
    %v491 = vmax.f32 %v434, 0.0
    %v492 = vmax.f32 %v437, 0.0
    %v493 = vmax.f32 %v439, 0.0
    %v494 = vmax.f32 %v442, 0.0
    %v495 = vmax.f32 %v444, 0.0
    %v496 = vmax.f32 %v447, 0.0
    %v497 = vmax.f32 %v449, 0.0
    %v498 = vmax.f32 %v452, 0.0
    %v499 = vmax.f32 %v454, 0.0
    %v500 = vmax.f32 %v457, 0.0
    %v501 = vmax.f32 %v459, 0.0
    %v502 = vmax.f32 %v462, 0.0
    %v503 = vmax.f32 %v464, 0.0
    %v504 = vmax.f32 %v467, 0.0
    %v505 = vmax.f32 %v469, 0.0
    %v506 = vmax.f32 %v472, 0.0
    %v507 = vmax.f32 %v474, 0.0
    %v508 = vpack.c.bf16 %v477, %v476
    %v509 = vpack.c.bf16 %v479, %v478
    %v510 = vpack.c.bf16 %v481, %v480
    %v511 = vpack.c.bf16 %v483, %v482
    %v512 = vpack.c.bf16 %v485, %v484
    %v513 = vpack.c.bf16 %v487, %v486
    %v514 = vpack.c.bf16 %v489, %v488
    %v515 = vpack.c.bf16 %v491, %v490
    %v516 = vpack.c.bf16 %v493, %v492
    %v517 = vpack.c.bf16 %v495, %v494
    %v518 = vpack.c.bf16 %v497, %v496
    %v519 = vpack.c.bf16 %v499, %v498
    %v520 = vpack.c.bf16 %v501, %v500
    %v521 = vpack.c.bf16 %v503, %v502
    %v522 = vpack.c.bf16 %v505, %v504
    %v523 = vpack.c.bf16 %v507, %v506
    %v524 = vld [vmem:[%s3] sm:$0xff]
    %v525 = vld [vmem:[%s3 + $0x8] sm:$0xff]
    %v526 = vld [vmem:[%s3 + $0x10] sm:$0xff]
    %v527 = vld [vmem:[%s3 + $0x18] sm:$0xff]
    %v528 = vld [vmem:[%s3 + $0x20] sm:$0xff]
    %v529 = vld [vmem:[%s3 + $0x28] sm:$0xff]
    %v530 = vld [vmem:[%s3 + $0x30] sm:$0xff]
    %v531 = vld [vmem:[%s3 + $0x38] sm:$0xff]
    %v532 = vld [vmem:[%s3 + $0x40] sm:$0xff]
    %v533 = vld [vmem:[%s3 + $0x48] sm:$0xff]
    %v534 = vld [vmem:[%s3 + $0x50] sm:$0xff]
    %v535 = vld [vmem:[%s3 + $0x58] sm:$0xff]
    %v536 = vld [vmem:[%s3 + $0x60] sm:$0xff]
    %v537 = vld [vmem:[%s3 + $0x68] sm:$0xff]
    %v538 = vld [vmem:[%s3 + $0x70] sm:$0xff]
    %v539 = vld [vmem:[%s3 + $0x78] sm:$0xff]
    %v540 = vld [vmem:[%s3 + $0x80] sm:$0xff]
    %v541 = vld [vmem:[%s3 + $0x88] sm:$0xff]
    %v542 = vld [vmem:[%s3 + $0x90] sm:$0xff]
    %v543 = vld [vmem:[%s3 + $0x98] sm:$0xff]
    %v544 = vld [vmem:[%s3 + $0xa0] sm:$0xff]
    %v545 = vld [vmem:[%s3 + $0xa8] sm:$0xff]
    %v546 = vld [vmem:[%s3 + $0xb0] sm:$0xff]
    %v547 = vld [vmem:[%s3 + $0xb8] sm:$0xff]
    %v548 = vld [vmem:[%s3 + $0xc0] sm:$0xff]
    %v549 = vld [vmem:[%s3 + $0xc8] sm:$0xff]
    %v550 = vld [vmem:[%s3 + $0xd0] sm:$0xff]
    %v551 = vld [vmem:[%s3 + $0xd8] sm:$0xff]
    %v552 = vld [vmem:[%s3 + $0xe0] sm:$0xff]
    %v553 = vld [vmem:[%s3 + $0xe8] sm:$0xff]
    %v554 = vld [vmem:[%s3 + $0xf0] sm:$0xff]
    %v555 = vld [vmem:[%s3 + $0xf8] sm:$0xff]
    %v556 = vld [vmem:[%s4] sm:$0xff]
    %v557 = vld [vmem:[%s4 + $0x8] sm:$0xff]
    %v558 = vld [vmem:[%s4 + $0x10] sm:$0xff]
    %v559 = vld [vmem:[%s4 + $0x18] sm:$0xff]
    %v560 = vld [vmem:[%s4 + $0x20] sm:$0xff]
    %v561 = vld [vmem:[%s4 + $0x28] sm:$0xff]
    %v562 = vld [vmem:[%s4 + $0x30] sm:$0xff]
    %v563 = vld [vmem:[%s4 + $0x38] sm:$0xff]
    %v564 = vld [vmem:[%s4 + $0x40] sm:$0xff]
    %v565 = vld [vmem:[%s4 + $0x48] sm:$0xff]
    %v566 = vld [vmem:[%s4 + $0x50] sm:$0xff]
    %v567 = vld [vmem:[%s4 + $0x58] sm:$0xff]
    %v568 = vld [vmem:[%s4 + $0x60] sm:$0xff]
    %v569 = vld [vmem:[%s4 + $0x68] sm:$0xff]
    %v570 = vld [vmem:[%s4 + $0x70] sm:$0xff]
    %v571 = vld [vmem:[%s4 + $0x78] sm:$0xff]
    %v572 = vld [vmem:[%s4 + $0x80] sm:$0xff]
    %v573 = vld [vmem:[%s4 + $0x88] sm:$0xff]
    %v574 = vld [vmem:[%s4 + $0x90] sm:$0xff]
    %v575 = vld [vmem:[%s4 + $0x98] sm:$0xff]
    %v576 = vld [vmem:[%s4 + $0xa0] sm:$0xff]
    %v577 = vld [vmem:[%s4 + $0xa8] sm:$0xff]
    %v578 = vld [vmem:[%s4 + $0xb0] sm:$0xff]
    %v579 = vld [vmem:[%s4 + $0xb8] sm:$0xff]
    %v580 = vld [vmem:[%s4 + $0xc0] sm:$0xff]
    %v581 = vld [vmem:[%s4 + $0xc8] sm:$0xff]
    %v582 = vld [vmem:[%s4 + $0xd0] sm:$0xff]
    %v583 = vld [vmem:[%s4 + $0xd8] sm:$0xff]
    %v584 = vld [vmem:[%s4 + $0xe0] sm:$0xff]
    %v585 = vld [vmem:[%s4 + $0xe8] sm:$0xff]
    %v586 = vld [vmem:[%s4 + $0xf0] sm:$0xff]
    %v587 = vld [vmem:[%s4 + $0xf8] sm:$0xff]
    %589 = vset.pattern.permute.xlu0 0
    %590 = vperm.xlu0 %589, %v556
    %v591 = vpop.permute.xlu0 %590
    %594 = vset.pattern.permute.xlu0 0
    %595 = vperm.xlu0 %594, %v557
    %v596 = vpop.permute.xlu0 %595
    %599 = vset.pattern.permute.xlu0 0
    %600 = vperm.xlu0 %599, %v558
    %v601 = vpop.permute.xlu0 %600
    %604 = vset.pattern.permute.xlu0 0
    %605 = vperm.xlu0 %604, %v559
    %v606 = vpop.permute.xlu0 %605
    %609 = vset.pattern.permute.xlu0 0
    %610 = vperm.xlu0 %609, %v560
    %v611 = vpop.permute.xlu0 %610
    %614 = vset.pattern.permute.xlu0 0
    %615 = vperm.xlu0 %614, %v561
    %v616 = vpop.permute.xlu0 %615
    %619 = vset.pattern.permute.xlu0 0
    %620 = vperm.xlu0 %619, %v562
    %v621 = vpop.permute.xlu0 %620
    %624 = vset.pattern.permute.xlu0 0
    %625 = vperm.xlu0 %624, %v563
    %v626 = vpop.permute.xlu0 %625
    %629 = vset.pattern.permute.xlu0 0
    %630 = vperm.xlu0 %629, %v564
    %v631 = vpop.permute.xlu0 %630
    %634 = vset.pattern.permute.xlu0 0
    %635 = vperm.xlu0 %634, %v565
    %v636 = vpop.permute.xlu0 %635
    %639 = vset.pattern.permute.xlu0 0
    %640 = vperm.xlu0 %639, %v566
    %v641 = vpop.permute.xlu0 %640
    %644 = vset.pattern.permute.xlu0 0
    %645 = vperm.xlu0 %644, %v567
    %v646 = vpop.permute.xlu0 %645
    %649 = vset.pattern.permute.xlu0 0
    %650 = vperm.xlu0 %649, %v568
    %v651 = vpop.permute.xlu0 %650
    %654 = vset.pattern.permute.xlu0 0
    %655 = vperm.xlu0 %654, %v569
    %v656 = vpop.permute.xlu0 %655
    %659 = vset.pattern.permute.xlu0 0
    %660 = vperm.xlu0 %659, %v570
    %v661 = vpop.permute.xlu0 %660
    %664 = vset.pattern.permute.xlu0 0
    %665 = vperm.xlu0 %664, %v571
    %v666 = vpop.permute.xlu0 %665
    %669 = vset.pattern.permute.xlu0 0
    %670 = vperm.xlu0 %669, %v572
    %v671 = vpop.permute.xlu0 %670
    %674 = vset.pattern.permute.xlu0 0
    %675 = vperm.xlu0 %674, %v573
    %v676 = vpop.permute.xlu0 %675
    %679 = vset.pattern.permute.xlu0 0
    %680 = vperm.xlu0 %679, %v574
    %v681 = vpop.permute.xlu0 %680
    %684 = vset.pattern.permute.xlu0 0
    %685 = vperm.xlu0 %684, %v575
    %v686 = vpop.permute.xlu0 %685
    %689 = vset.pattern.permute.xlu0 0
    %690 = vperm.xlu0 %689, %v576
    %v691 = vpop.permute.xlu0 %690
    %694 = vset.pattern.permute.xlu0 0
    %695 = vperm.xlu0 %694, %v577
    %v696 = vpop.permute.xlu0 %695
    %699 = vset.pattern.permute.xlu0 0
    %700 = vperm.xlu0 %699, %v578
    %v701 = vpop.permute.xlu0 %700
    %704 = vset.pattern.permute.xlu0 0
    %705 = vperm.xlu0 %704, %v579
    %v706 = vpop.permute.xlu0 %705
    %709 = vset.pattern.permute.xlu0 0
    %710 = vperm.xlu0 %709, %v580
    %v711 = vpop.permute.xlu0 %710
    %714 = vset.pattern.permute.xlu0 0
    %715 = vperm.xlu0 %714, %v581
    %v716 = vpop.permute.xlu0 %715
    %719 = vset.pattern.permute.xlu0 0
    %720 = vperm.xlu0 %719, %v582
    %v721 = vpop.permute.xlu0 %720
    %724 = vset.pattern.permute.xlu0 0
    %725 = vperm.xlu0 %724, %v583
    %v726 = vpop.permute.xlu0 %725
    %729 = vset.pattern.permute.xlu0 0
    %730 = vperm.xlu0 %729, %v584
    %v731 = vpop.permute.xlu0 %730
    %734 = vset.pattern.permute.xlu0 0
    %735 = vperm.xlu0 %734, %v585
    %v736 = vpop.permute.xlu0 %735
    %739 = vset.pattern.permute.xlu0 0
    %740 = vperm.xlu0 %739, %v586
    %v741 = vpop.permute.xlu0 %740
    %744 = vset.pattern.permute.xlu0 0
    %745 = vperm.xlu0 %744, %v587
    %v746 = vpop.permute.xlu0 %745
    %v780 = vunpack.c.l.b16 %v524
    %v781 = vunpack.c.h.b16 %v524
    %v782 = vunpack.c.l.b16 %v525
    %v783 = vunpack.c.h.b16 %v525
    %v784 = vunpack.c.l.b16 %v526
    %v785 = vunpack.c.h.b16 %v526
    %v786 = vunpack.c.l.b16 %v527
    %v787 = vunpack.c.h.b16 %v527
    %v788 = vunpack.c.l.b16 %v528
    %v789 = vunpack.c.h.b16 %v528
    %v790 = vunpack.c.l.b16 %v529
    %v791 = vunpack.c.h.b16 %v529
    %v792 = vunpack.c.l.b16 %v530
    %v793 = vunpack.c.h.b16 %v530
    %v794 = vunpack.c.l.b16 %v531
    %v795 = vunpack.c.h.b16 %v531
    %v796 = vunpack.c.l.b16 %v532
    %v797 = vunpack.c.h.b16 %v532
    %v798 = vunpack.c.l.b16 %v533
    %v799 = vunpack.c.h.b16 %v533
    %v800 = vunpack.c.l.b16 %v534
    %v801 = vunpack.c.h.b16 %v534
    %v802 = vunpack.c.l.b16 %v535
    %v803 = vunpack.c.h.b16 %v535
    %v804 = vunpack.c.l.b16 %v536
    %v805 = vunpack.c.h.b16 %v536
    %v806 = vunpack.c.l.b16 %v537
    %v807 = vunpack.c.h.b16 %v537
    %v808 = vunpack.c.l.b16 %v538
    %v809 = vunpack.c.h.b16 %v538
    %v810 = vunpack.c.l.b16 %v539
    %v811 = vunpack.c.h.b16 %v539
    %v812 = vunpack.c.l.b16 %v540
    %v813 = vunpack.c.h.b16 %v540
    %v814 = vunpack.c.l.b16 %v541
    %v815 = vunpack.c.h.b16 %v541
    %v816 = vunpack.c.l.b16 %v542
    %v817 = vunpack.c.h.b16 %v542
    %v818 = vunpack.c.l.b16 %v543
    %v819 = vunpack.c.h.b16 %v543
    %v820 = vunpack.c.l.b16 %v544
    %v821 = vunpack.c.h.b16 %v544
    %v822 = vunpack.c.l.b16 %v545
    %v823 = vunpack.c.h.b16 %v545
    %v824 = vunpack.c.l.b16 %v546
    %v825 = vunpack.c.h.b16 %v546
    %v826 = vunpack.c.l.b16 %v547
    %v827 = vunpack.c.h.b16 %v547
    %v828 = vunpack.c.l.b16 %v548
    %v829 = vunpack.c.h.b16 %v548
    %v830 = vunpack.c.l.b16 %v549
    %v831 = vunpack.c.h.b16 %v549
    %v832 = vunpack.c.l.b16 %v550
    %v833 = vunpack.c.h.b16 %v550
    %v834 = vunpack.c.l.b16 %v551
    %v835 = vunpack.c.h.b16 %v551
    %v836 = vunpack.c.l.b16 %v552
    %v837 = vunpack.c.h.b16 %v552
    %v838 = vunpack.c.l.b16 %v553
    %v839 = vunpack.c.h.b16 %v553
    %v840 = vunpack.c.l.b16 %v554
    %v841 = vunpack.c.h.b16 %v554
    %v842 = vunpack.c.l.b16 %v555
    %v843 = vunpack.c.h.b16 %v555
    %v844 = vpack.c.b16 %v782, %v780
    %v845 = vpack.c.b16 %v783, %v781
    %v846 = vpack.c.b16 %v786, %v784
    %v847 = vpack.c.b16 %v787, %v785
    %v848 = vpack.c.b16 %v790, %v788
    %v849 = vpack.c.b16 %v791, %v789
    %v850 = vpack.c.b16 %v794, %v792
    %v851 = vpack.c.b16 %v795, %v793
    %v852 = vpack.c.b16 %v798, %v796
    %v853 = vpack.c.b16 %v799, %v797
    %v854 = vpack.c.b16 %v802, %v800
    %v855 = vpack.c.b16 %v803, %v801
    %v856 = vpack.c.b16 %v806, %v804
    %v857 = vpack.c.b16 %v807, %v805
    %v858 = vpack.c.b16 %v810, %v808
    %v859 = vpack.c.b16 %v811, %v809
    %v860 = vpack.c.b16 %v814, %v812
    %v861 = vpack.c.b16 %v815, %v813
    %v862 = vpack.c.b16 %v818, %v816
    %v863 = vpack.c.b16 %v819, %v817
    %v864 = vpack.c.b16 %v822, %v820
    %v865 = vpack.c.b16 %v823, %v821
    %v866 = vpack.c.b16 %v826, %v824
    %v867 = vpack.c.b16 %v827, %v825
    %v868 = vpack.c.b16 %v830, %v828
    %v869 = vpack.c.b16 %v831, %v829
    %v870 = vpack.c.b16 %v834, %v832
    %v871 = vpack.c.b16 %v835, %v833
    %v872 = vpack.c.b16 %v838, %v836
    %v873 = vpack.c.b16 %v839, %v837
    %v874 = vpack.c.b16 %v842, %v840
    %v875 = vpack.c.b16 %v843, %v841
    %908 = vmatpush.bf16.msra.mxu0 %v515
    %909 = vmatpush.bf16.msra.mxu0 %v514
    %910 = vmatpush.bf16.msra.mxu0 %v513
    %911 = vmatpush.bf16.msra.mxu0 %v512
    %912 = vmatpush.bf16.msra.mxu0 %v511
    %913 = vmatpush.bf16.msra.mxu0 %v510
    %914 = vmatpush.bf16.msra.mxu0 %v509
    %915 = vmatpush.bf16.msra.mxu0 %v508
    %916 = vmatmul.bf16.gmra.mxu0 %v844
    %v917 = vpop.f32.mrf.mxu0
    %v918 = vadd.f32 %v591, %v917
    %v919 = vpop.f32.mrf.mxu0
    %v920 = vadd.f32 %v596, %v919
    %921 = vmatmul.bf16.gmra.mxu0 %v846
    %v922 = vpop.f32.mrf.mxu0
    %v923 = vadd.f32 %v601, %v922
    %v924 = vpop.f32.mrf.mxu0
    %v925 = vadd.f32 %v606, %v924
    %926 = vmatmul.bf16.gmra.mxu0 %v848
    %v927 = vpop.f32.mrf.mxu0
    %v928 = vadd.f32 %v611, %v927
    %v929 = vpop.f32.mrf.mxu0
    %v930 = vadd.f32 %v616, %v929
    %931 = vmatmul.bf16.gmra.mxu0 %v850
    %v932 = vpop.f32.mrf.mxu0
    %v933 = vadd.f32 %v621, %v932
    %v934 = vpop.f32.mrf.mxu0
    %v935 = vadd.f32 %v626, %v934
    %936 = vmatmul.bf16.gmra.mxu0 %v852
    %v937 = vpop.f32.mrf.mxu0
    %v938 = vadd.f32 %v631, %v937
    %v939 = vpop.f32.mrf.mxu0
    %v940 = vadd.f32 %v636, %v939
    %941 = vmatmul.bf16.gmra.mxu0 %v854
    %v942 = vpop.f32.mrf.mxu0
    %v943 = vadd.f32 %v641, %v942
    %v944 = vpop.f32.mrf.mxu0
    %v945 = vadd.f32 %v646, %v944
    %946 = vmatmul.bf16.gmra.mxu0 %v856
    %v947 = vpop.f32.mrf.mxu0
    %v948 = vadd.f32 %v651, %v947
    %v949 = vpop.f32.mrf.mxu0
    %v950 = vadd.f32 %v656, %v949
    %951 = vmatmul.bf16.gmra.mxu0 %v858
    %v952 = vpop.f32.mrf.mxu0
    %v953 = vadd.f32 %v661, %v952
    %v954 = vpop.f32.mrf.mxu0
    %v955 = vadd.f32 %v666, %v954
    %956 = vmatmul.bf16.gmra.mxu0 %v860
    %v957 = vpop.f32.mrf.mxu0
    %v958 = vadd.f32 %v671, %v957
    %v959 = vpop.f32.mrf.mxu0
    %v960 = vadd.f32 %v676, %v959
    %961 = vmatmul.bf16.gmra.mxu0 %v862
    %v962 = vpop.f32.mrf.mxu0
    %v963 = vadd.f32 %v681, %v962
    %v964 = vpop.f32.mrf.mxu0
    %v965 = vadd.f32 %v686, %v964
    %966 = vmatmul.bf16.gmra.mxu0 %v864
    %v967 = vpop.f32.mrf.mxu0
    %v968 = vadd.f32 %v691, %v967
    %v969 = vpop.f32.mrf.mxu0
    %v970 = vadd.f32 %v696, %v969
    %971 = vmatmul.bf16.gmra.mxu0 %v866
    %v972 = vpop.f32.mrf.mxu0
    %v973 = vadd.f32 %v701, %v972
    %v974 = vpop.f32.mrf.mxu0
    %v975 = vadd.f32 %v706, %v974
    %976 = vmatmul.bf16.gmra.mxu0 %v868
    %v977 = vpop.f32.mrf.mxu0
    %v978 = vadd.f32 %v711, %v977
    %v979 = vpop.f32.mrf.mxu0
    %v980 = vadd.f32 %v716, %v979
    %981 = vmatmul.bf16.gmra.mxu0 %v870
    %v982 = vpop.f32.mrf.mxu0
    %v983 = vadd.f32 %v721, %v982
    %v984 = vpop.f32.mrf.mxu0
    %v985 = vadd.f32 %v726, %v984
    %986 = vmatmul.bf16.gmra.mxu0 %v872
    %v987 = vpop.f32.mrf.mxu0
    %v988 = vadd.f32 %v731, %v987
    %v989 = vpop.f32.mrf.mxu0
    %v990 = vadd.f32 %v736, %v989
    %991 = vmatmul.bf16.gmra.mxu0 %v874
    %v992 = vpop.f32.mrf.mxu0
    %v993 = vadd.f32 %v741, %v992
    %v994 = vpop.f32.mrf.mxu0
    %v995 = vadd.f32 %v746, %v994
    %996 = vdwg.mxu0
    %997 = vmatpush.bf16.msra.mxu0 %v523
    %998 = vmatpush.bf16.msra.mxu0 %v522
    %999 = vmatpush.bf16.msra.mxu0 %v521
    %1000 = vmatpush.bf16.msra.mxu0 %v520
    %1001 = vmatpush.bf16.msra.mxu0 %v519
    %1002 = vmatpush.bf16.msra.mxu0 %v518
    %1003 = vmatpush.bf16.msra.mxu0 %v517
    %1004 = vmatpush.bf16.msra.mxu0 %v516
    %1005 = vmatmul.bf16.gmra.mxu0 %v845
    %v1006 = vpop.f32.mrf.mxu0
    %v1007 = vadd.f32 %v918, %v1006
    %v1008 = vpop.f32.mrf.mxu0
    %v1009 = vadd.f32 %v920, %v1008
    %1010 = vmatmul.bf16.gmra.mxu0 %v847
    %v1011 = vpop.f32.mrf.mxu0
    %v1012 = vadd.f32 %v923, %v1011
    %v1013 = vpop.f32.mrf.mxu0
    %v1014 = vadd.f32 %v925, %v1013
    %1015 = vmatmul.bf16.gmra.mxu0 %v849
    %v1016 = vpop.f32.mrf.mxu0
    %v1017 = vadd.f32 %v928, %v1016
    %v1018 = vpop.f32.mrf.mxu0
    %v1019 = vadd.f32 %v930, %v1018
    %1020 = vmatmul.bf16.gmra.mxu0 %v851
    %v1021 = vpop.f32.mrf.mxu0
    %v1022 = vadd.f32 %v933, %v1021
    %v1023 = vpop.f32.mrf.mxu0
    %v1024 = vadd.f32 %v935, %v1023
    %1025 = vmatmul.bf16.gmra.mxu0 %v853
    %v1026 = vpop.f32.mrf.mxu0
    %v1027 = vadd.f32 %v938, %v1026
    %v1028 = vpop.f32.mrf.mxu0
    %v1029 = vadd.f32 %v940, %v1028
    %1030 = vmatmul.bf16.gmra.mxu0 %v855
    %v1031 = vpop.f32.mrf.mxu0
    %v1032 = vadd.f32 %v943, %v1031
    %v1033 = vpop.f32.mrf.mxu0
    %v1034 = vadd.f32 %v945, %v1033
    %1035 = vmatmul.bf16.gmra.mxu0 %v857
    %v1036 = vpop.f32.mrf.mxu0
    %v1037 = vadd.f32 %v948, %v1036
    %v1038 = vpop.f32.mrf.mxu0
    %v1039 = vadd.f32 %v950, %v1038
    %1040 = vmatmul.bf16.gmra.mxu0 %v859
    %v1041 = vpop.f32.mrf.mxu0
    %v1042 = vadd.f32 %v953, %v1041
    %v1043 = vpop.f32.mrf.mxu0
    %v1044 = vadd.f32 %v955, %v1043
    %1045 = vmatmul.bf16.gmra.mxu0 %v861
    %v1046 = vpop.f32.mrf.mxu0
    %v1047 = vadd.f32 %v958, %v1046
    %v1048 = vpop.f32.mrf.mxu0
    %v1049 = vadd.f32 %v960, %v1048
    %1050 = vmatmul.bf16.gmra.mxu0 %v863
    %v1051 = vpop.f32.mrf.mxu0
    %v1052 = vadd.f32 %v963, %v1051
    %v1053 = vpop.f32.mrf.mxu0
    %v1054 = vadd.f32 %v965, %v1053
    %1055 = vmatmul.bf16.gmra.mxu0 %v865
    %v1056 = vpop.f32.mrf.mxu0
    %v1057 = vadd.f32 %v968, %v1056
    %v1058 = vpop.f32.mrf.mxu0
    %v1059 = vadd.f32 %v970, %v1058
    %1060 = vmatmul.bf16.gmra.mxu0 %v867
    %v1061 = vpop.f32.mrf.mxu0
    %v1062 = vadd.f32 %v973, %v1061
    %v1063 = vpop.f32.mrf.mxu0
    %v1064 = vadd.f32 %v975, %v1063
    %1065 = vmatmul.bf16.gmra.mxu0 %v869
    %v1066 = vpop.f32.mrf.mxu0
    %v1067 = vadd.f32 %v978, %v1066
    %v1068 = vpop.f32.mrf.mxu0
    %v1069 = vadd.f32 %v980, %v1068
    %1070 = vmatmul.bf16.gmra.mxu0 %v871
    %v1071 = vpop.f32.mrf.mxu0
    %v1072 = vadd.f32 %v983, %v1071
    %v1073 = vpop.f32.mrf.mxu0
    %v1074 = vadd.f32 %v985, %v1073
    %1075 = vmatmul.bf16.gmra.mxu0 %v873
    %v1076 = vpop.f32.mrf.mxu0
    %v1077 = vadd.f32 %v988, %v1076
    %v1078 = vpop.f32.mrf.mxu0
    %v1079 = vadd.f32 %v990, %v1078
    %1080 = vmatmul.bf16.gmra.mxu0 %v875
    %v1081 = vpop.f32.mrf.mxu0
    %v1082 = vadd.f32 %v993, %v1081
    %v1083 = vpop.f32.mrf.mxu0
    %v1084 = vadd.f32 %v995, %v1083
    %1085 = vdwg.mxu0
    %v1086 = vmax.f32 %v1007, 0.0
    %v1087 = vmax.f32 %v1009, 0.0
    %v1088 = vmax.f32 %v1012, 0.0
    %v1089 = vmax.f32 %v1014, 0.0
    %v1090 = vmax.f32 %v1017, 0.0
    %v1091 = vmax.f32 %v1019, 0.0
    %v1092 = vmax.f32 %v1022, 0.0
    %v1093 = vmax.f32 %v1024, 0.0
    %v1094 = vmax.f32 %v1027, 0.0
    %v1095 = vmax.f32 %v1029, 0.0
    %v1096 = vmax.f32 %v1032, 0.0
    %v1097 = vmax.f32 %v1034, 0.0
    %v1098 = vmax.f32 %v1037, 0.0
    %v1099 = vmax.f32 %v1039, 0.0
    %v1100 = vmax.f32 %v1042, 0.0
    %v1101 = vmax.f32 %v1044, 0.0
    %v1102 = vmax.f32 %v1047, 0.0
    %v1103 = vmax.f32 %v1049, 0.0
    %v1104 = vmax.f32 %v1052, 0.0
    %v1105 = vmax.f32 %v1054, 0.0
    %v1106 = vmax.f32 %v1057, 0.0
    %v1107 = vmax.f32 %v1059, 0.0
    %v1108 = vmax.f32 %v1062, 0.0
    %v1109 = vmax.f32 %v1064, 0.0
    %v1110 = vmax.f32 %v1067, 0.0
    %v1111 = vmax.f32 %v1069, 0.0
    %v1112 = vmax.f32 %v1072, 0.0
    %v1113 = vmax.f32 %v1074, 0.0
    %v1114 = vmax.f32 %v1077, 0.0
    %v1115 = vmax.f32 %v1079, 0.0
    %v1116 = vmax.f32 %v1082, 0.0
    %v1117 = vmax.f32 %v1084, 0.0
    %v1118 = vld [vmem:[%s5] sm:$0xff]
    %v1119 = vld [vmem:[%s5 + $0x8] sm:$0xff]
    %v1120 = vld [vmem:[%s6] sm:$0xff]
    %1122 = vset.pattern.permute.xlu0 0
    %1123 = vperm.xlu0 %1122, %v1120
    %v1124 = vpop.permute.xlu0 %1123
    %1126 = vmatpush.msra.mxu0 %v1101
    %1127 = vmatpush.msra.mxu0 %v1100
    %1128 = vmatpush.msra.mxu0 %v1099
    %1129 = vmatpush.msra.mxu0 %v1098
    %1130 = vmatpush.msra.mxu0 %v1097
    %1131 = vmatpush.msra.mxu0 %v1096
    %1132 = vmatpush.msra.mxu0 %v1095
    %1133 = vmatpush.msra.mxu0 %v1094
    %1134 = vmatpush.msra.mxu0 %v1093
    %1135 = vmatpush.msra.mxu0 %v1092
    %1136 = vmatpush.msra.mxu0 %v1091
    %1137 = vmatpush.msra.mxu0 %v1090
    %1138 = vmatpush.msra.mxu0 %v1089
    %1139 = vmatpush.msra.mxu0 %v1088
    %1140 = vmatpush.msra.mxu0 %v1087
    %1141 = vmatpush.msra.mxu0 %v1086
    %1142 = vmatmul.f32.gmra.mxu0 %v1118
    %v1143 = vpop.f32.mrf.mxu0
    %v1144 = vadd.f32 %v1124, %v1143
    %1145 = vdwg.mxu0
    %1146 = vmatpush.msra.mxu0 %v1117
    %1147 = vmatpush.msra.mxu0 %v1116
    %1148 = vmatpush.msra.mxu0 %v1115
    %1149 = vmatpush.msra.mxu0 %v1114
    %1150 = vmatpush.msra.mxu0 %v1113
    %1151 = vmatpush.msra.mxu0 %v1112
    %1152 = vmatpush.msra.mxu0 %v1111
    %1153 = vmatpush.msra.mxu0 %v1110
    %1154 = vmatpush.msra.mxu0 %v1109
    %1155 = vmatpush.msra.mxu0 %v1108
    %1156 = vmatpush.msra.mxu0 %v1107
    %1157 = vmatpush.msra.mxu0 %v1106
    %1158 = vmatpush.msra.mxu0 %v1105
    %1159 = vmatpush.msra.mxu0 %v1104
    %1160 = vmatpush.msra.mxu0 %v1103
    %1161 = vmatpush.msra.mxu0 %v1102
    %1162 = vmatmul.f32.gmra.mxu0 %v1119
    %v1163 = vpop.f32.mrf.mxu0
    %v1164 = vadd.f32 %v1144, %v1163
    %1165 = vdwg.mxu0
    %1166 = vst [vmem:[#allocation2] sm:$0xff] %v1164
    // Predicated region
    $region30: #{tpu_custom_call.1} parent=1 // pred_check
      _
    $region31: #{tpu_custom_call.1} parent=1 // pred_check_branch
      %1168 = sbr.rel (0) target = $region33
    $region32: #{tpu_custom_call.1} parent=1 // pred_region
      %1170 = vsyncadd [#allocation3], 0
      %s1172 = sshll.u32 [#allocation2], 4
      %s1173 = int_to_ptr.vmem [resolvable:$true] %s1172
      %s1174 = sshll.u32 %s7, 4
      %s1175 = int_to_ptr.hbm [resolvable:$true] %s1174
      %1177 = dma.vmem_to_hbm [thread:$0]  %s1173, 128, %s1175, [#allocation3]
    $region33: #{tpu_custom_call.1} parent=1 // pred_fallthru
      _
    // Predicated region
    $region34: #{tpu_custom_call.1} parent=1 // pred_check
      _
    $region35: #{tpu_custom_call.1} parent=1 // pred_check_branch
      %1179 = sbr.rel (0) target = $region37
    $region36: #{tpu_custom_call.1} parent=1 // pred_region
      %1181 = dma.done [#allocation3], 128
    $region37: #{tpu_custom_call.1} parent=1 // pred_fallthru
      _
    %1182 = vsyncpa [#allocation3], 1

</llo_original>
